<compile_context>
chip_gen: v7x
topology: tpu7x:2x2x1
jax: 0.10.0
libtpu: 0.0.40
codegen_flags: <defaults>
</compile_context>

<pallas_src>
import functools

import jax
import jax.numpy as jnp
from jax.experimental import pallas as pl
from jax.experimental.pallas import tpu as pltpu

# ---------------- model hyper-parameters (small, synthetic) ----------------
B = 2            # batch
SEQ = 16         # sequence length (BERT output seq dim)
EMB = 128        # EMBEDDING
HIDDEN_DIM = 8   # conv out_channels
CLASS_NUM = 4
KSIZES = (3, 5, 7)
VOCAB = 30
DROP_PROB = 0.5  # unused at inference


# ------------------------------ Pallas kernel ------------------------------
def textcnn_kernel(x_ref, wcat_ref, bconv_ref, wl_ref, bl_ref, out_ref, *,
                   batch_tile, seq, hidden, ksizes):
    # x_ref: (batch_tile*seq, EMB) rows of the BERT output for this batch tile.
    # One fused MXU matmul covering every tap of every conv for every row.
    y = jnp.dot(x_ref[...], wcat_ref[...],
                preferred_element_type=jnp.float32)      # (Bt*seq, sum(k)*H)

    rows = []
    for b in range(batch_tile):              # static unroll (tiny batch tile)
        base = b * seq
        parts = []
        col = 0
        for k in ksizes:
            length = seq - k + 1
            # conv_k output = sum over taps of row-shifted column groups of y
            acc = y[base:base + length, col:col + hidden]
            for dt in range(1, k):
                acc = acc + y[base + dt:base + dt + length,
                              col + dt * hidden:col + (dt + 1) * hidden]
            # global max-pool over valid positions (bias/relu hoisted below)
            parts.append(jnp.max(acc, axis=0, keepdims=True))      # (1, H)
            col += k * hidden
        rows.append(jnp.concatenate(parts, axis=1))                # (1, 3H)
    feat = jnp.concatenate(rows, axis=0)                           # (Bt, 3H)

    # bias + relu, hoisted past the max-pool (relu(.+b) is monotone)
    feat = jnp.maximum(feat + bconv_ref[...], 0.0)
    # dropout: identity (inference)
    out_ref[...] = (jnp.dot(feat, wl_ref[...],
                            preferred_element_type=jnp.float32)
                    + bl_ref[...])                                 # (Bt, C)


def textcnn_forward(x, params, *, batch_tile=None):
    """x: (B, SEQ, EMB) float32  ->  logits (B, CLASS_NUM) float32."""
    wcat, bconv, wl, bl = params
    bsz, seq, emb = x.shape
    if batch_tile is None:
        batch_tile = bsz                 # whole batch in a single grid step
    assert bsz % batch_tile == 0
    num_tiles = bsz // batch_tile
    x2d = x.reshape(bsz * seq, emb)      # lane-dense (rows, 128) layout

    kern = functools.partial(textcnn_kernel, batch_tile=batch_tile, seq=seq,
                             hidden=HIDDEN_DIM, ksizes=KSIZES)

    out = pl.pallas_call(
        kern,
        out_shape=jax.ShapeDtypeStruct((bsz, CLASS_NUM), jnp.float32),
        grid=(num_tiles,),
        in_specs=[
            pl.BlockSpec((batch_tile * seq, emb), lambda i: (i, 0)),
            pl.BlockSpec(wcat.shape, lambda i: (0, 0)),
            pl.BlockSpec(bconv.shape, lambda i: (0, 0)),
            pl.BlockSpec(wl.shape, lambda i: (0, 0)),
            pl.BlockSpec(bl.shape, lambda i: (0, 0)),
        ],
        out_specs=pl.BlockSpec((batch_tile, CLASS_NUM), lambda i: (i, 0)),
        compiler_params=pltpu.CompilerParams(
            # batch-tile axis is parallel so larger batches shard across the
            # two TensorCores on v7x; at num_tiles=1 it is a single step.
            dimension_semantics=("parallel",)),
    )(x2d, wcat, bconv, wl, bl)
    return out


# ------------------------ host-side weight fusion --------------------------
def build_fused_params(conv_weights, conv_biases, lw, lb):
    """Re-layout conv weights (H,k,EMB) into one (EMB, sum(k)*H) slab, biases
    into (1, 3H); linear -> (3H, C) and (1, C)."""
    cols = []
    for cw in conv_weights:                    # (H, k, EMB)
        for dt in range(cw.shape[1]):
            cols.append(cw[:, dt, :].T)        # (EMB, H) for tap dt
    wcat = jnp.concatenate(cols, axis=1)       # (EMB, (K1+K2+K3)*H)
    bconv = jnp.concatenate(conv_biases).reshape(1, -1)      # (1, 3H)
    return wcat, bconv, lw.T, lb.reshape(1, CLASS_NUM)


# --------------------------- pure-JAX reference ----------------------------
def reference_forward(x, torch_params):
    """Matches PyTorch conv_and_pool + linear semantics on (B,1,SEQ,EMB)."""
    (cw1, cb1), (cw2, cb2), (cw3, cb3), (lw, lb) = torch_params
    seq = x.shape[1]

    def conv_pool(cw, cb):  # cw: (H, k, EMB) [PyTorch (H,1,k,EMB) squeezed]
        k = cw.shape[1]
        length = seq - k + 1
        windows = jnp.stack([x[:, dt:dt + length, :] for dt in range(k)],
                            axis=2)                          # (B, L, k, EMB)
        out = jnp.einsum('blke,hke->blh', windows, cw) + cb  # (B, L, H)
        out = jnp.maximum(out, 0.0)
        return jnp.max(out, axis=1)                          # (B, H)

    feats = jnp.concatenate(
        [conv_pool(cw1, cb1), conv_pool(cw2, cb2), conv_pool(cw3, cb3)],
        axis=1)                                              # (B, 3H)
    return feats @ lw.T + lb                                 # (B, CLASS_NUM)


# ------------------------------- main / init -------------------------------
if __name__ == "__main__":
    key = jax.random.PRNGKey(0)
    keys = jax.random.split(key, 12)

    # TODO(synk): the frozen pretrained BertModel is not reproduced here; a
    # deterministic frozen embedding lookup stands in for bert(input, mask)[0].
    emb_table = jax.random.normal(keys[0], (VOCAB, EMB), jnp.float32) * 0.02
    input_ids = jax.random.randint(keys[1], (B, SEQ), 0, VOCAB)
    mask = jnp.ones((B, SEQ), jnp.float32)
    bert_out = emb_table[input_ids] * mask[..., None]        # (B, SEQ, EMB)

    # Conv2d weights in PyTorch layout (out_ch, in_ch=1, k, EMB) -> in_ch squeezed.
    cw1 = jax.random.normal(keys[2], (HIDDEN_DIM, KSIZES[0], EMB), jnp.float32) * 0.05
    cb1 = jax.random.normal(keys[3], (HIDDEN_DIM,), jnp.float32) * 0.05
    cw2 = jax.random.normal(keys[4], (HIDDEN_DIM, KSIZES[1], EMB), jnp.float32) * 0.05
    cb2 = jax.random.normal(keys[5], (HIDDEN_DIM,), jnp.float32) * 0.05
    cw3 = jax.random.normal(keys[6], (HIDDEN_DIM, KSIZES[2], EMB), jnp.float32) * 0.05
    cb3 = jax.random.normal(keys[7], (HIDDEN_DIM,), jnp.float32) * 0.05
    lw = jax.random.normal(keys[8], (CLASS_NUM, 3 * HIDDEN_DIM), jnp.float32) * 0.1
    lb = jax.random.normal(keys[9], (CLASS_NUM,), jnp.float32) * 0.1

    kernel_params = build_fused_params([cw1, cw2, cw3], [cb1, cb2, cb3], lw, lb)

    logits = jax.block_until_ready(textcnn_forward(bert_out, kernel_params))

    ref = reference_forward(bert_out,
                            ((cw1, cb1), (cw2, cb2), (cw3, cb3), (lw, lb)))
    assert logits.shape == (B, CLASS_NUM)
    assert jnp.allclose(logits, ref, atol=1e-3, rtol=1e-3), (logits, ref)

    print("KERNEL_OK")
</pallas_src>

<mosaic_0001>
module attributes {stable_mosaic.version = 11 : i64} {
  func.func @textcnn_kernel(%arg0: i32, %arg1: memref<32x128xf32, #tpu.memory_space<vmem>>, %arg2: memref<128x120xf32, #tpu.memory_space<vmem>>, %arg3: memref<1x24xf32, #tpu.memory_space<vmem>>, %arg4: memref<24x4xf32, #tpu.memory_space<vmem>>, %arg5: memref<1x4xf32, #tpu.memory_space<vmem>>, %arg6: memref<2x4xf32, #tpu.memory_space<vmem>>) attributes {dimension_semantics = [#tpu.dimension_semantics<parallel>], iteration_bounds = array<i64: 1>, scalar_prefetch = 0 : i64, scratch_operands = 0 : i64, tpu.core_type = #tpu.core_type<tc>, window_params = [{transform_indices = @transform_0, window_bounds = array<i64: 32, 128>}, {pipeline_mode = #tpu.pipeline_mode<synchronous>, transform_indices = @transform_1, window_bounds = array<i64: 128, 120>}, {pipeline_mode = #tpu.pipeline_mode<synchronous>, transform_indices = @transform_2, window_bounds = array<i64: 1, 24>}, {pipeline_mode = #tpu.pipeline_mode<synchronous>, transform_indices = @transform_3, window_bounds = array<i64: 24, 4>}, {pipeline_mode = #tpu.pipeline_mode<synchronous>, transform_indices = @transform_4, window_bounds = array<i64: 1, 4>}, {transform_indices = @transform_5, window_bounds = array<i64: 2, 4>}]} {
    %c0 = arith.constant 0 : index
    %c0_0 = arith.constant 0 : index
    %0 = vector.load %arg1[%c0, %c0_0] : memref<32x128xf32, #tpu.memory_space<vmem>>, vector<32x128xf32>
    %c0_1 = arith.constant 0 : index
    %c0_2 = arith.constant 0 : index
    %1 = vector.load %arg2[%c0_1, %c0_2] : memref<128x120xf32, #tpu.memory_space<vmem>>, vector<128x120xf32>
    %cst = arith.constant dense<0.000000e+00> : vector<32x120xf32>
    %2 = tpu.matmul %0, %1, %cst {dimension_numbers = #tpu.dot_dimension_numbers<[1], [0], [0], [1], [0, 0, 1, 1], [], []>} : vector<32x128xf32>, vector<128x120xf32>, vector<32x120xf32> -> vector<32x120xf32>
    %3 = vector.extract_strided_slice %2 {offsets = [0, 0], sizes = [14, 8], strides = [1, 1]} : vector<32x120xf32> to vector<14x8xf32>
    %4 = vector.extract_strided_slice %2 {offsets = [1, 8], sizes = [14, 8], strides = [1, 1]} : vector<32x120xf32> to vector<14x8xf32>
    %5 = arith.addf %3, %4 : vector<14x8xf32>
    %6 = vector.extract_strided_slice %2 {offsets = [2, 16], sizes = [14, 8], strides = [1, 1]} : vector<32x120xf32> to vector<14x8xf32>
    %7 = arith.addf %5, %6 : vector<14x8xf32>
    %cst_3 = arith.constant dense<0xFF800000> : vector<8xf32>
    %8 = vector.multi_reduction <maximumf>, %7, %cst_3 [0] : vector<14x8xf32> to vector<8xf32>
    %9 = vector.shape_cast %8 : vector<8xf32> to vector<1x8xf32>
    %10 = vector.extract_strided_slice %2 {offsets = [0, 24], sizes = [12, 8], strides = [1, 1]} : vector<32x120xf32> to vector<12x8xf32>
    %11 = vector.extract_strided_slice %2 {offsets = [1, 32], sizes = [12, 8], strides = [1, 1]} : vector<32x120xf32> to vector<12x8xf32>
    %12 = arith.addf %10, %11 : vector<12x8xf32>
    %13 = vector.extract_strided_slice %2 {offsets = [2, 40], sizes = [12, 8], strides = [1, 1]} : vector<32x120xf32> to vector<12x8xf32>
    %14 = arith.addf %12, %13 : vector<12x8xf32>
    %15 = vector.extract_strided_slice %2 {offsets = [3, 48], sizes = [12, 8], strides = [1, 1]} : vector<32x120xf32> to vector<12x8xf32>
    %16 = arith.addf %14, %15 : vector<12x8xf32>
    %17 = vector.extract_strided_slice %2 {offsets = [4, 56], sizes = [12, 8], strides = [1, 1]} : vector<32x120xf32> to vector<12x8xf32>
    %18 = arith.addf %16, %17 : vector<12x8xf32>
    %cst_4 = arith.constant dense<0xFF800000> : vector<8xf32>
    %19 = vector.multi_reduction <maximumf>, %18, %cst_4 [0] : vector<12x8xf32> to vector<8xf32>
    %20 = vector.shape_cast %19 : vector<8xf32> to vector<1x8xf32>
    %21 = vector.extract_strided_slice %2 {offsets = [0, 64], sizes = [10, 8], strides = [1, 1]} : vector<32x120xf32> to vector<10x8xf32>
    %22 = vector.extract_strided_slice %2 {offsets = [1, 72], sizes = [10, 8], strides = [1, 1]} : vector<32x120xf32> to vector<10x8xf32>
    %23 = arith.addf %21, %22 : vector<10x8xf32>
    %24 = vector.extract_strided_slice %2 {offsets = [2, 80], sizes = [10, 8], strides = [1, 1]} : vector<32x120xf32> to vector<10x8xf32>
    %25 = arith.addf %23, %24 : vector<10x8xf32>
    %26 = vector.extract_strided_slice %2 {offsets = [3, 88], sizes = [10, 8], strides = [1, 1]} : vector<32x120xf32> to vector<10x8xf32>
    %27 = arith.addf %25, %26 : vector<10x8xf32>
    %28 = vector.extract_strided_slice %2 {offsets = [4, 96], sizes = [10, 8], strides = [1, 1]} : vector<32x120xf32> to vector<10x8xf32>
    %29 = arith.addf %27, %28 : vector<10x8xf32>
    %30 = vector.extract_strided_slice %2 {offsets = [5, 104], sizes = [10, 8], strides = [1, 1]} : vector<32x120xf32> to vector<10x8xf32>
    %31 = arith.addf %29, %30 : vector<10x8xf32>
    %32 = vector.extract_strided_slice %2 {offsets = [6, 112], sizes = [10, 8], strides = [1, 1]} : vector<32x120xf32> to vector<10x8xf32>
    %33 = arith.addf %31, %32 : vector<10x8xf32>
    %cst_5 = arith.constant dense<0xFF800000> : vector<8xf32>
    %34 = vector.multi_reduction <maximumf>, %33, %cst_5 [0] : vector<10x8xf32> to vector<8xf32>
    %35 = vector.shape_cast %34 : vector<8xf32> to vector<1x8xf32>
    %36 = tpu.concatenate %9, %20, %35 in 1 : vector<1x8xf32>, vector<1x8xf32>, vector<1x8xf32> -> vector<1x24xf32>
    %37 = vector.extract_strided_slice %2 {offsets = [16, 0], sizes = [14, 8], strides = [1, 1]} : vector<32x120xf32> to vector<14x8xf32>
    %38 = vector.extract_strided_slice %2 {offsets = [17, 8], sizes = [14, 8], strides = [1, 1]} : vector<32x120xf32> to vector<14x8xf32>
    %39 = arith.addf %37, %38 : vector<14x8xf32>
    %40 = vector.extract_strided_slice %2 {offsets = [18, 16], sizes = [14, 8], strides = [1, 1]} : vector<32x120xf32> to vector<14x8xf32>
    %41 = arith.addf %39, %40 : vector<14x8xf32>
    %cst_6 = arith.constant dense<0xFF800000> : vector<8xf32>
    %42 = vector.multi_reduction <maximumf>, %41, %cst_6 [0] : vector<14x8xf32> to vector<8xf32>
    %43 = vector.shape_cast %42 : vector<8xf32> to vector<1x8xf32>
    %44 = vector.extract_strided_slice %2 {offsets = [16, 24], sizes = [12, 8], strides = [1, 1]} : vector<32x120xf32> to vector<12x8xf32>
    %45 = vector.extract_strided_slice %2 {offsets = [17, 32], sizes = [12, 8], strides = [1, 1]} : vector<32x120xf32> to vector<12x8xf32>
    %46 = arith.addf %44, %45 : vector<12x8xf32>
    %47 = vector.extract_strided_slice %2 {offsets = [18, 40], sizes = [12, 8], strides = [1, 1]} : vector<32x120xf32> to vector<12x8xf32>
    %48 = arith.addf %46, %47 : vector<12x8xf32>
    %49 = vector.extract_strided_slice %2 {offsets = [19, 48], sizes = [12, 8], strides = [1, 1]} : vector<32x120xf32> to vector<12x8xf32>
    %50 = arith.addf %48, %49 : vector<12x8xf32>
    %51 = vector.extract_strided_slice %2 {offsets = [20, 56], sizes = [12, 8], strides = [1, 1]} : vector<32x120xf32> to vector<12x8xf32>
    %52 = arith.addf %50, %51 : vector<12x8xf32>
    %cst_7 = arith.constant dense<0xFF800000> : vector<8xf32>
    %53 = vector.multi_reduction <maximumf>, %52, %cst_7 [0] : vector<12x8xf32> to vector<8xf32>
    %54 = vector.shape_cast %53 : vector<8xf32> to vector<1x8xf32>
    %55 = vector.extract_strided_slice %2 {offsets = [16, 64], sizes = [10, 8], strides = [1, 1]} : vector<32x120xf32> to vector<10x8xf32>
    %56 = vector.extract_strided_slice %2 {offsets = [17, 72], sizes = [10, 8], strides = [1, 1]} : vector<32x120xf32> to vector<10x8xf32>
    %57 = arith.addf %55, %56 : vector<10x8xf32>
    %58 = vector.extract_strided_slice %2 {offsets = [18, 80], sizes = [10, 8], strides = [1, 1]} : vector<32x120xf32> to vector<10x8xf32>
    %59 = arith.addf %57, %58 : vector<10x8xf32>
    %60 = vector.extract_strided_slice %2 {offsets = [19, 88], sizes = [10, 8], strides = [1, 1]} : vector<32x120xf32> to vector<10x8xf32>
    %61 = arith.addf %59, %60 : vector<10x8xf32>
    %62 = vector.extract_strided_slice %2 {offsets = [20, 96], sizes = [10, 8], strides = [1, 1]} : vector<32x120xf32> to vector<10x8xf32>
    %63 = arith.addf %61, %62 : vector<10x8xf32>
    %64 = vector.extract_strided_slice %2 {offsets = [21, 104], sizes = [10, 8], strides = [1, 1]} : vector<32x120xf32> to vector<10x8xf32>
    %65 = arith.addf %63, %64 : vector<10x8xf32>
    %66 = vector.extract_strided_slice %2 {offsets = [22, 112], sizes = [10, 8], strides = [1, 1]} : vector<32x120xf32> to vector<10x8xf32>
    %67 = arith.addf %65, %66 : vector<10x8xf32>
    %cst_8 = arith.constant dense<0xFF800000> : vector<8xf32>
    %68 = vector.multi_reduction <maximumf>, %67, %cst_8 [0] : vector<10x8xf32> to vector<8xf32>
    %69 = vector.shape_cast %68 : vector<8xf32> to vector<1x8xf32>
    %70 = tpu.concatenate %43, %54, %69 in 1 : vector<1x8xf32>, vector<1x8xf32>, vector<1x8xf32> -> vector<1x24xf32>
    %71 = tpu.concatenate %36, %70 in 0 : vector<1x24xf32>, vector<1x24xf32> -> vector<2x24xf32>
    %c0_9 = arith.constant 0 : index
    %c0_10 = arith.constant 0 : index
    %72 = vector.load %arg3[%c0_9, %c0_10] : memref<1x24xf32, #tpu.memory_space<vmem>>, vector<1x24xf32>
    %73 = vector.broadcast %72 : vector<1x24xf32> to vector<2x24xf32>
    %74 = arith.addf %71, %73 : vector<2x24xf32>
    %cst_11 = arith.constant 0.000000e+00 : f32
    %75 = vector.broadcast %cst_11 : f32 to vector<2x24xf32>
    %76 = arith.maximumf %74, %75 : vector<2x24xf32>
    %c0_12 = arith.constant 0 : index
    %c0_13 = arith.constant 0 : index
    %77 = vector.load %arg4[%c0_12, %c0_13] : memref<24x4xf32, #tpu.memory_space<vmem>>, vector<24x4xf32>
    %cst_14 = arith.constant dense<0.000000e+00> : vector<2x4xf32>
    %78 = tpu.matmul %76, %77, %cst_14 {dimension_numbers = #tpu.dot_dimension_numbers<[1], [0], [0], [1], [0, 0, 1, 1], [], []>} : vector<2x24xf32>, vector<24x4xf32>, vector<2x4xf32> -> vector<2x4xf32>
    %c0_15 = arith.constant 0 : index
    %c0_16 = arith.constant 0 : index
    %79 = vector.load %arg5[%c0_15, %c0_16] : memref<1x4xf32, #tpu.memory_space<vmem>>, vector<1x4xf32>
    %80 = vector.broadcast %79 : vector<1x4xf32> to vector<2x4xf32>
    %81 = arith.addf %78, %80 : vector<2x4xf32>
    %c0_17 = arith.constant 0 : index
    %c0_18 = arith.constant 0 : index
    %82 = vector.load %arg6[%c0_17, %c0_18] : memref<2x4xf32, #tpu.memory_space<vmem>>, vector<2x4xf32>
    tpu.vector_store %arg6[%c0_17, %c0_18], %81 {strides = array<i32>} : memref<2x4xf32, #tpu.memory_space<vmem>>, vector<2x4xf32>,
    return
  }
  func.func @transform_0(%arg0: i32) -> (i32, i32) {
    %c0_i32 = arith.constant 0 : i32
    %c0_i32_0 = arith.constant 0 : i32
    return %arg0, %c0_i32 : i32, i32
  }
  func.func @transform_1(%arg0: i32) -> (i32, i32) {
    %c0_i32 = arith.constant 0 : i32
    %c0_i32_0 = arith.constant 0 : i32
    %c0_i32_1 = arith.constant 0 : i32
    return %c0_i32, %c0_i32_0 : i32, i32
  }
  func.func @transform_2(%arg0: i32) -> (i32, i32) {
    %c0_i32 = arith.constant 0 : i32
    %c0_i32_0 = arith.constant 0 : i32
    %c0_i32_1 = arith.constant 0 : i32
    return %c0_i32, %c0_i32_0 : i32, i32
  }
  func.func @transform_3(%arg0: i32) -> (i32, i32) {
    %c0_i32 = arith.constant 0 : i32
    %c0_i32_0 = arith.constant 0 : i32
    %c0_i32_1 = arith.constant 0 : i32
    return %c0_i32, %c0_i32_0 : i32, i32
  }
  func.func @transform_4(%arg0: i32) -> (i32, i32) {
    %c0_i32 = arith.constant 0 : i32
    %c0_i32_0 = arith.constant 0 : i32
    %c0_i32_1 = arith.constant 0 : i32
    return %c0_i32, %c0_i32_0 : i32, i32
  }
  func.func @transform_5(%arg0: i32) -> (i32, i32) {
    %c0_i32 = arith.constant 0 : i32
    %c0_i32_0 = arith.constant 0 : i32
    return %arg0, %c0_i32 : i32, i32
  }
}

</mosaic_0001>

<llo_original>
// kernel: tpu_custom_call.1
$region0: #{tpu_custom_call.1}
  #allocation0 [shape = 'u32[]', space=smem, size = 0x4, offset = 0x4, fixed_abs, tag = 'smem constant byte address 0x4 - core index']
  #allocation1 [shape = 'u32[144,128]{1,0:T(1,128)}', space=vmem, size = 0x12000, scoped, tag = 'internal scratch']
  %s0 = inlined_call_operand.vmem [shape: f32[32,128], index: 0, kind: input, shape index: {}]
  %s1 = inlined_call_operand.vmem [shape: f32[128,120], index: 1, kind: input, shape index: {}]
  %s2 = inlined_call_operand.vmem [shape: f32[1,24], index: 2, kind: input, shape index: {}]
  %s3 = inlined_call_operand.vmem [shape: f32[24,4], index: 3, kind: input, shape index: {}]
  %s4 = inlined_call_operand.vmem [shape: f32[1,4], index: 4, kind: input, shape index: {}]
  %s5 = inlined_call_operand.hbm [shape: f32[2,4], index: 5, kind: output, shape index: {}]
  %s6 = sld [smem:[#allocation0]]
  $region30: #{tpu_custom_call.1} parent=0
    _
  %s8 = ssub.s32 1, %s6
  %s9 = scalar_select 0, %s8, %s6
  $region1: #{tpu_custom_call.1} parent=0
    #allocation2 [shape = 'u8[1024]{0}', space=vmem, size = 0x400, scoped, tag = 'output window, operand 0, single buffered']
    #allocation3 [shape = 's32[1]{0}', space=sflag, size = 0x4, scoped, tag = 'scoped memory for tpu_custom_call.1']
    %10 = vsyncpa [#allocation3], 0
    // Predicated region
    $region2: #{tpu_custom_call.1} parent=1 // pred_check
      _
    $region3: #{tpu_custom_call.1} parent=1 // pred_check_branch
      %12 = sbr.rel (0) target = $region5
    $region4: #{tpu_custom_call.1} parent=1 // pred_region
      _
    $region5: #{tpu_custom_call.1} parent=1 // pred_fallthru
      _
    // Predicated region
    $region6: #{tpu_custom_call.1} parent=1 // pred_check
      _
    $region7: #{tpu_custom_call.1} parent=1 // pred_check_branch
      %14 = sbr.rel (0) target = $region9
    $region8: #{tpu_custom_call.1} parent=1 // pred_region
      _
    $region9: #{tpu_custom_call.1} parent=1 // pred_fallthru
      _
    // Predicated region
    $region10: #{tpu_custom_call.1} parent=1 // pred_check
      _
    $region11: #{tpu_custom_call.1} parent=1 // pred_check_branch
      %16 = sbr.rel (0) target = $region13
    $region12: #{tpu_custom_call.1} parent=1 // pred_region
      _
    $region13: #{tpu_custom_call.1} parent=1 // pred_fallthru
      _
    // Predicated region
    $region14: #{tpu_custom_call.1} parent=1 // pred_check
      _
    $region15: #{tpu_custom_call.1} parent=1 // pred_check_branch
      %18 = sbr.rel (0) target = $region17
    $region16: #{tpu_custom_call.1} parent=1 // pred_region
      _
    $region17: #{tpu_custom_call.1} parent=1 // pred_fallthru
      _
    // Predicated region
    $region18: #{tpu_custom_call.1} parent=1 // pred_check
      _
    $region19: #{tpu_custom_call.1} parent=1 // pred_check_branch
      %20 = sbr.rel (0) target = $region21
    $region20: #{tpu_custom_call.1} parent=1 // pred_region
      _
    $region21: #{tpu_custom_call.1} parent=1 // pred_fallthru
      _
    %v21 = vld [vmem:[%s0] sm:$0xff]
    %v22 = vld [vmem:[%s0 + $0x8] sm:$0xff]
    %v23 = vld [vmem:[%s0 + $0x10] sm:$0xff]
    %v24 = vld [vmem:[%s0 + $0x18] sm:$0xff]
    %v25 = vld [vmem:[%s1] sm:$0xff]
    %v26 = vld [vmem:[%s1 + $0x8] sm:$0xff]
    %v27 = vld [vmem:[%s1 + $0x10] sm:$0xff]
    %v28 = vld [vmem:[%s1 + $0x18] sm:$0xff]
    %v29 = vld [vmem:[%s1 + $0x20] sm:$0xff]
    %v30 = vld [vmem:[%s1 + $0x28] sm:$0xff]
    %v31 = vld [vmem:[%s1 + $0x30] sm:$0xff]
    %v32 = vld [vmem:[%s1 + $0x38] sm:$0xff]
    %v33 = vld [vmem:[%s1 + $0x40] sm:$0xff]
    %v34 = vld [vmem:[%s1 + $0x48] sm:$0xff]
    %v35 = vld [vmem:[%s1 + $0x50] sm:$0xff]
    %v36 = vld [vmem:[%s1 + $0x58] sm:$0xff]
    %v37 = vld [vmem:[%s1 + $0x60] sm:$0xff]
    %v38 = vld [vmem:[%s1 + $0x68] sm:$0xff]
    %v39 = vld [vmem:[%s1 + $0x70] sm:$0xff]
    %v40 = vld [vmem:[%s1 + $0x78] sm:$0xff]
    %41 = vmatprep.subr.mxu0 0.0
    %42 = vmatpush1.msra.mxu0 %v25
    %43 = vmatprep.subr.mxu0 0.0
    %44 = vmatpush1.msra.mxu0 %v26
    %45 = vmatprep.subr.mxu0 0.0
    %46 = vmatpush1.msra.mxu0 %v27
    %47 = vmatprep.subr.mxu0 0.0
    %48 = vmatpush1.msra.mxu0 %v28
    %49 = vmatprep.subr.mxu0 0.0
    %50 = vmatpush1.msra.mxu0 %v29
    %51 = vmatprep.subr.mxu0 0.0
    %52 = vmatpush1.msra.mxu0 %v30
    %53 = vmatprep.subr.mxu0 0.0
    %54 = vmatpush1.msra.mxu0 %v31
    %55 = vmatprep.subr.mxu0 0.0
    %56 = vmatpush1.msra.mxu0 %v32
    %57 = vmatprep.subr.mxu0 0.0
    %58 = vmatpush1.msra.mxu0 %v33
    %59 = vmatprep.subr.mxu0 0.0
    %60 = vmatpush1.msra.mxu0 %v34
    %61 = vmatprep.subr.mxu0 0.0
    %62 = vmatpush1.msra.mxu0 %v35
    %63 = vmatprep.subr.mxu0 0.0
    %64 = vmatpush1.msra.mxu0 %v36
    %65 = vmatprep.subr.mxu0 0.0
    %66 = vmatpush1.msra.mxu0 %v37
    %67 = vmatprep.subr.mxu0 0.0
    %68 = vmatpush1.msra.mxu0 %v38
    %69 = vmatprep.subr.mxu0 0.0
    %70 = vmatpush1.msra.mxu0 %v39
    %71 = vmatprep.subr.mxu0 0.0
    %72 = vmatpush1.msra.mxu0 %v40
    %73 = vmatprep.subr.mxu0 0.0
    %74 = vmatpush1.msra.mxu0 0.0
    %75 = vmatprep.subr.mxu0 0.0
    %76 = vmatpush1.msra.mxu0 0.0
    %77 = vmatprep.subr.mxu0 0.0
    %78 = vmatpush1.msra.mxu0 0.0
    %79 = vmatprep.subr.mxu0 0.0
    %80 = vmatpush1.msra.mxu0 0.0
    %81 = vmatprep.subr.mxu0 0.0
    %82 = vmatpush1.msra.mxu0 0.0
    %83 = vmatprep.subr.mxu0 0.0
    %84 = vmatpush1.msra.mxu0 0.0
    %85 = vmatprep.subr.mxu0 0.0
    %86 = vmatpush1.msra.mxu0 0.0
    %87 = vmatprep.subr.mxu0 0.0
    %88 = vmatpush1.msra.mxu0 0.0
    %89 = vmatprep.subr.mxu0 0.0
    %90 = vmatpush1.msra.mxu0 0.0
    %91 = vmatprep.subr.mxu0 0.0
    %92 = vmatpush1.msra.mxu0 0.0
    %93 = vmatprep.subr.mxu0 0.0
    %94 = vmatpush1.msra.mxu0 0.0
    %95 = vmatprep.subr.mxu0 0.0
    %96 = vmatpush1.msra.mxu0 0.0
    %97 = vmatprep.subr.mxu0 0.0
    %98 = vmatpush1.msra.mxu0 0.0
    %99 = vmatprep.subr.mxu0 0.0
    %100 = vmatpush1.msra.mxu0 0.0
    %101 = vmatprep.subr.mxu0 0.0
    %102 = vmatpush1.msra.mxu0 0.0
    %103 = vmatprep.subr.mxu0 0.0
    %104 = vmatpush1.msra.mxu0 0.0
    %105 = vmatprep.mubr.f32.mxu0 0.0
    %106 = vmatmul.mubr.f32.gmra.mrb[0].mxu0 %v21
    %v107 = vpop.f32.mrb[0].mxu0
    %v108 = vadd.f32 0.0, %v107
    %v109 = vpop.f32.mrb[0].mxu0
    %110 = vmatprep.mubr.f32.mxu0 0.0
    %111 = vmatmul.mubr.f32.gmra.mrb[0].mxu0 %v22
    %v112 = vpop.f32.mrb[0].mxu0
    %v113 = vadd.f32 0.0, %v112
    %v114 = vpop.f32.mrb[0].mxu0
    %115 = vmatprep.mubr.f32.mxu0 0.0
    %116 = vmatmul.mubr.f32.gmra.mrb[0].mxu0 %v23
    %v117 = vpop.f32.mrb[0].mxu0
    %v118 = vadd.f32 0.0, %v117
    %v119 = vpop.f32.mrb[0].mxu0
    %120 = vmatprep.mubr.f32.mxu0 0.0
    %121 = vmatmul.mubr.f32.gmra.mrb[0].mxu0 %v24
    %v122 = vpop.f32.mrb[0].mxu0
    %v123 = vadd.f32 0.0, %v122
    %v124 = vpop.f32.mrb[0].mxu0
    %125 = vdwg.mxu0
    %vm128 = vcmask 1046528
    %v129 = vrot.slane %v108, 1
    %v130 = vrot.slane %v113, 1
    %v131 = vsel %vm128, %v129, %v130
    %132 = vrot.lane.b32.xlu0 %v131, 120
    %v133 = vpop.permute.xlu0 %132
    %134 = vrot.lane.b32.xlu0 %v130, 120
    %v135 = vpop.permute.xlu0 %134
    %v138 = vadd.f32 %v108, %v133
    %v139 = vadd.f32 %v113, %v135
    %vm140 = vcmask 1045504
    %v141 = vrot.slane %v108, 2
    %v142 = vrot.slane %v113, 2
    %v143 = vsel %vm140, %v141, %v142
    %144 = vrot.lane.b32.xlu0 %v143, 112
    %v145 = vpop.permute.xlu0 %144
    %146 = vrot.lane.b32.xlu0 %v142, 112
    %v147 = vpop.permute.xlu0 %146
    %v150 = vadd.f32 %v138, %v145
    %v151 = vadd.f32 %v139, %v147
    %vm152 = vcmask 64512
    %v153 = vsel %vm152, %v150, -inf
    %vm154 = vcmask 62464
    %v155 = vsel %vm154, %v151, -inf
    %v156 = vmax.f32 %v153, %v155
    %v157 = vrot.slane %v156, 4
    %v158 = vmax.f32 %v156, %v157
    %v159 = vrot.slane %v158, 2
    %v160 = vmax.f32 %v158, %v159
    %v161 = vrot.slane %v160, 1
    %v162 = vmax.f32 %v160, %v161
    %vm163 = vcmask 1044480
    %v164 = vrot.slane %v108, 3
    %v165 = vrot.slane %v113, 3
    %v166 = vsel %vm163, %v164, %v165
    %167 = vrot.lane.b32.xlu0 %v166, 104
    %v168 = vpop.permute.xlu0 %167
    %169 = vrot.lane.b32.xlu0 %v165, 104
    %v170 = vpop.permute.xlu0 %169
    %v173 = vadd.f32 %v150, %v168
    %v174 = vadd.f32 %v151, %v170
    %vm175 = vcmask 1043456
    %v176 = vrot.slane %v108, 4
    %v177 = vrot.slane %v113, 4
    %v178 = vsel %vm175, %v176, %v177
    %179 = vrot.lane.b32.xlu0 %v178, 96
    %v180 = vpop.permute.xlu0 %179
    %181 = vrot.lane.b32.xlu0 %v177, 96
    %v182 = vpop.permute.xlu0 %181
    %v185 = vadd.f32 %v173, %v180
    %v186 = vadd.f32 %v174, %v182
    %vm187 = vcmask 261312
    %v188 = vsel %vm187, %v185, -inf
    %vm189 = vcmask 257216
    %v190 = vsel %vm189, %v186, -inf
    %v191 = vmax.f32 %v188, %v190
    %v192 = vrot.slane %v191, 4
    %v193 = vmax.f32 %v191, %v192
    %v194 = vrot.slane %v193, 2
    %v195 = vmax.f32 %v193, %v194
    %v196 = vrot.slane %v195, 1
    %v197 = vmax.f32 %v195, %v196
    %vm198 = vcmask 1042432
    %v199 = vrot.slane %v108, 5
    %v200 = vrot.slane %v113, 5
    %v201 = vsel %vm198, %v199, %v200
    %202 = vrot.lane.b32.xlu0 %v201, 88
    %v203 = vpop.permute.xlu0 %202
    %204 = vrot.lane.b32.xlu0 %v200, 88
    %v205 = vpop.permute.xlu0 %204
    %v208 = vadd.f32 %v185, %v203
    %v209 = vadd.f32 %v186, %v205
    %vm210 = vcmask 1041408
    %v211 = vrot.slane %v108, 6
    %v212 = vrot.slane %v113, 6
    %v213 = vsel %vm210, %v211, %v212
    %214 = vrot.lane.b32.xlu0 %v213, 80
    %v215 = vpop.permute.xlu0 %214
    %216 = vrot.lane.b32.xlu0 %v212, 80
    %v217 = vpop.permute.xlu0 %216
    %v220 = vadd.f32 %v208, %v215
    %v221 = vadd.f32 %v209, %v217
    %vm222 = vcmask 589312
    %v223 = vsel %vm222, %v220, -inf
    %vm224 = vcmask 583168
    %v225 = vsel %vm224, %v221, -inf
    %v226 = vmax.f32 %v223, %v225
    %v227 = vrot.slane %v226, 4
    %v228 = vmax.f32 %v226, %v227
    %v229 = vrot.slane %v228, 2
    %v230 = vmax.f32 %v228, %v229
    %v231 = vrot.slane %v230, 1
    %v232 = vmax.f32 %v230, %v231
    %234 = vrot.lane.b32.xlu0 %v197, 112
    %v235 = vpop.permute.xlu0 %234
    %238 = vrot.lane.b32.xlu0 %v232, 80
    %v239 = vpop.permute.xlu0 %238
    %v241 = vsel %vm152, %v162, %v235
    %vm242 = vcmask 130048
    %v243 = vsel %vm242, %v241, %v239
    %v246 = vrot.slane %v118, 1
    %v247 = vrot.slane %v123, 1
    %v248 = vsel %vm128, %v246, %v247
    %249 = vrot.lane.b32.xlu0 %v248, 120
    %v250 = vpop.permute.xlu0 %249
    %251 = vrot.lane.b32.xlu0 %v247, 120
    %v252 = vpop.permute.xlu0 %251
    %v255 = vadd.f32 %v118, %v250
    %v256 = vadd.f32 %v123, %v252
    %v257 = vrot.slane %v118, 2
    %v258 = vrot.slane %v123, 2
    %v259 = vsel %vm140, %v257, %v258
    %260 = vrot.lane.b32.xlu0 %v259, 112
    %v261 = vpop.permute.xlu0 %260
    %262 = vrot.lane.b32.xlu0 %v258, 112
    %v263 = vpop.permute.xlu0 %262
    %v266 = vadd.f32 %v255, %v261
    %v267 = vadd.f32 %v256, %v263
    %v268 = vsel %vm152, %v266, -inf
    %v269 = vsel %vm154, %v267, -inf
    %v270 = vmax.f32 %v268, %v269
    %v271 = vrot.slane %v270, 4
    %v272 = vmax.f32 %v270, %v271
    %v273 = vrot.slane %v272, 2
    %v274 = vmax.f32 %v272, %v273
    %v275 = vrot.slane %v274, 1
    %v276 = vmax.f32 %v274, %v275
    %v277 = vrot.slane %v118, 3
    %v278 = vrot.slane %v123, 3
    %v279 = vsel %vm163, %v277, %v278
    %280 = vrot.lane.b32.xlu0 %v279, 104
    %v281 = vpop.permute.xlu0 %280
    %282 = vrot.lane.b32.xlu0 %v278, 104
    %v283 = vpop.permute.xlu0 %282
    %v286 = vadd.f32 %v266, %v281
    %v287 = vadd.f32 %v267, %v283
    %v288 = vrot.slane %v118, 4
    %v289 = vrot.slane %v123, 4
    %v290 = vsel %vm175, %v288, %v289
    %291 = vrot.lane.b32.xlu0 %v290, 96
    %v292 = vpop.permute.xlu0 %291
    %293 = vrot.lane.b32.xlu0 %v289, 96
    %v294 = vpop.permute.xlu0 %293
    %v297 = vadd.f32 %v286, %v292
    %v298 = vadd.f32 %v287, %v294
    %v299 = vsel %vm187, %v297, -inf
    %v300 = vsel %vm189, %v298, -inf
    %v301 = vmax.f32 %v299, %v300
    %v302 = vrot.slane %v301, 4
    %v303 = vmax.f32 %v301, %v302
    %v304 = vrot.slane %v303, 2
    %v305 = vmax.f32 %v303, %v304
    %v306 = vrot.slane %v305, 1
    %v307 = vmax.f32 %v305, %v306
    %v308 = vrot.slane %v118, 5
    %v309 = vrot.slane %v123, 5
    %v310 = vsel %vm198, %v308, %v309
    %311 = vrot.lane.b32.xlu0 %v310, 88
    %v312 = vpop.permute.xlu0 %311
    %313 = vrot.lane.b32.xlu0 %v309, 88
    %v314 = vpop.permute.xlu0 %313
    %v317 = vadd.f32 %v297, %v312
    %v318 = vadd.f32 %v298, %v314
    %v319 = vrot.slane %v118, 6
    %v320 = vrot.slane %v123, 6
    %v321 = vsel %vm210, %v319, %v320
    %322 = vrot.lane.b32.xlu0 %v321, 80
    %v323 = vpop.permute.xlu0 %322
    %324 = vrot.lane.b32.xlu0 %v320, 80
    %v325 = vpop.permute.xlu0 %324
    %v328 = vadd.f32 %v317, %v323
    %v329 = vadd.f32 %v318, %v325
    %v330 = vsel %vm222, %v328, -inf
    %v331 = vsel %vm224, %v329, -inf
    %v332 = vmax.f32 %v330, %v331
    %v333 = vrot.slane %v332, 4
    %v334 = vmax.f32 %v332, %v333
    %v335 = vrot.slane %v334, 2
    %v336 = vmax.f32 %v334, %v335
    %v337 = vrot.slane %v336, 1
    %v338 = vmax.f32 %v336, %v337
    %340 = vrot.lane.b32.xlu0 %v307, 112
    %v341 = vpop.permute.xlu0 %340
    %344 = vrot.lane.b32.xlu0 %v338, 80
    %v345 = vpop.permute.xlu0 %344
    %v347 = vsel %vm152, %v276, %v341
    %v348 = vsel %vm242, %v347, %v345
    %v350 = vrot.slane %v348, 7
    %vm352 = vcmask 1040384
    %v353 = vsel %vm352, %v243, %v350
    %v354 = vld [vmem:[%s2] sm:$0x1]
    %v356 = vlaneseq
    %v357 = vshrl.u32 %v356, 7
    %v358 = vsub.s32 0, %v357
    %v359 = vrot.slane %v354, %v358
    %v361 = vadd.f32 %v353, %v359
    %v362 = vmax.f32 %v361, 0.0
    %v363 = vld [vmem:[%s3] sm:$0xff]
    %v364 = vld [vmem:[%s3 + $0x8] sm:$0xff]
    %v365 = vld [vmem:[%s3 + $0x10] sm:$0xff]
    %v366 = vld [vmem:[%s4] sm:$0x1]
    %v368 = vlaneseq
    %v369 = vshrl.u32 %v368, 7
    %v370 = vsub.s32 0, %v369
    %v371 = vrot.slane %v366, %v370
    %vm373 = vcmask 195584
    %v375 = vsel %vm373, %v362, 0
    %377 = vmatprep.subr.mxu0 0.0
    %378 = vmatpush1.msra.mxu0 %v363
    %379 = vmatprep.subr.mxu0 0.0
    %380 = vmatpush1.msra.mxu0 %v364
    %381 = vmatprep.subr.mxu0 0.0
    %382 = vmatpush1.msra.mxu0 %v365
    %383 = vmatprep.subr.mxu0 0.0
    %384 = vmatpush1.msra.mxu0 0.0
    %385 = vmatprep.subr.mxu0 0.0
    %386 = vmatpush1.msra.mxu0 0.0
    %387 = vmatprep.subr.mxu0 0.0
    %388 = vmatpush1.msra.mxu0 0.0
    %389 = vmatprep.subr.mxu0 0.0
    %390 = vmatpush1.msra.mxu0 0.0
    %391 = vmatprep.subr.mxu0 0.0
    %392 = vmatpush1.msra.mxu0 0.0
    %393 = vmatprep.subr.mxu0 0.0
    %394 = vmatpush1.msra.mxu0 0.0
    %395 = vmatprep.subr.mxu0 0.0
    %396 = vmatpush1.msra.mxu0 0.0
    %397 = vmatprep.subr.mxu0 0.0
    %398 = vmatpush1.msra.mxu0 0.0
    %399 = vmatprep.subr.mxu0 0.0
    %400 = vmatpush1.msra.mxu0 0.0
    %401 = vmatprep.subr.mxu0 0.0
    %402 = vmatpush1.msra.mxu0 0.0
    %403 = vmatprep.subr.mxu0 0.0
    %404 = vmatpush1.msra.mxu0 0.0
    %405 = vmatprep.subr.mxu0 0.0
    %406 = vmatpush1.msra.mxu0 0.0
    %407 = vmatprep.subr.mxu0 0.0
    %408 = vmatpush1.msra.mxu0 0.0
    %409 = vmatprep.subr.mxu0 0.0
    %410 = vmatpush1.msra.mxu0 0.0
    %411 = vmatprep.subr.mxu0 0.0
    %412 = vmatpush1.msra.mxu0 0.0
    %413 = vmatprep.subr.mxu0 0.0
    %414 = vmatpush1.msra.mxu0 0.0
    %415 = vmatprep.subr.mxu0 0.0
    %416 = vmatpush1.msra.mxu0 0.0
    %417 = vmatprep.subr.mxu0 0.0
    %418 = vmatpush1.msra.mxu0 0.0
    %419 = vmatprep.subr.mxu0 0.0
    %420 = vmatpush1.msra.mxu0 0.0
    %421 = vmatprep.subr.mxu0 0.0
    %422 = vmatpush1.msra.mxu0 0.0
    %423 = vmatprep.subr.mxu0 0.0
    %424 = vmatpush1.msra.mxu0 0.0
    %425 = vmatprep.subr.mxu0 0.0
    %426 = vmatpush1.msra.mxu0 0.0
    %427 = vmatprep.subr.mxu0 0.0
    %428 = vmatpush1.msra.mxu0 0.0
    %429 = vmatprep.subr.mxu0 0.0
    %430 = vmatpush1.msra.mxu0 0.0
    %431 = vmatprep.subr.mxu0 0.0
    %432 = vmatpush1.msra.mxu0 0.0
    %433 = vmatprep.subr.mxu0 0.0
    %434 = vmatpush1.msra.mxu0 0.0
    %435 = vmatprep.subr.mxu0 0.0
    %436 = vmatpush1.msra.mxu0 0.0
    %437 = vmatprep.subr.mxu0 0.0
    %438 = vmatpush1.msra.mxu0 0.0
    %439 = vmatprep.subr.mxu0 0.0
    %440 = vmatpush1.msra.mxu0 0.0
    %441 = vmatprep.mubr.f32.mxu0 0.0
    %442 = vmatmul.mubr.f32.gmra.mrb[0].mxu0 %v375
    %v443 = vpop.f32.mrb[0].mxu0
    %v444 = vadd.f32 %v371, %v443
    %v445 = vpop.f32.mrb[0].mxu0
    %446 = vdwg.mxu0
    %vm447 = vcmask 25600
    %448 = vst.msk [vmem:[#allocation2] sm:$0x3] %vm447, %v444
    // Predicated region
    $region22: #{tpu_custom_call.1} parent=1 // pred_check
      _
    $region23: #{tpu_custom_call.1} parent=1 // pred_check_branch
      %450 = sbr.rel (0) target = $region25
    $region24: #{tpu_custom_call.1} parent=1 // pred_region
      %s452 = ssub.s32 32, 32
      %453 = vsyncadd [#allocation3], %s452
      %s455 = sshll.u32 [#allocation2], 4
      %s456 = int_to_ptr.vmem [resolvable:$true] %s455
      %458 = dma.vmem_to_hbm [thread:$0]  %s456, 32, %s5, [#allocation3]
    $region25: #{tpu_custom_call.1} parent=1 // pred_fallthru
      _
    // Predicated region
    $region26: #{tpu_custom_call.1} parent=1 // pred_check
      _
    $region27: #{tpu_custom_call.1} parent=1 // pred_check_branch
      %460 = sbr.rel (0) target = $region29
    $region28: #{tpu_custom_call.1} parent=1 // pred_region
      %461 = dma.done [#allocation3], 32
    $region29: #{tpu_custom_call.1} parent=1 // pred_fallthru
      _
    %462 = vsyncpa [#allocation3], 1

</llo_original>
